<compile_context>
chip_gen: v7x
topology: tpu7x:2x2x1
jax: 0.10.0
libtpu: 0.0.40
codegen_flags: <defaults>
</compile_context>

<pallas_src>
import math

import numpy as np

import jax
import jax.numpy as jnp
from jax.experimental import pallas as pl
from jax.experimental.pallas import tpu as pltpu

TOTAL_JOINTS = 7
INPUT_SIZE = 3 * TOTAL_JOINTS   # 21
OUTPUT_SIZE = TOTAL_JOINTS      # 7

LANE = 128                      # lane width: batch tiles are multiples of this
MIN_TILE_B = 1024               # don't split into tiles smaller than this
MAX_TILE_B = 8192               # lanes per grid step (comfortably < 32 MiB VMEM)


def _round_up(n, m):
    return ((n + m - 1) // m) * m


def _make_mlp_kernel(num_linear_layers: int):
    """Kernel for an MLP with `num_linear_layers` Linear layers, transposed.

    Refs layout: (x_ref, w0, b0, w1, b1, ..., w_{L-1}, b_{L-1}, out_ref).
      x_ref  : (input_size, tile_b)    compute dtype (bf16 or f32), batch on lanes
      w_i    : (out_i, in_i)           compute dtype (PyTorch-native orientation)
      b_i    : (out_i, 1)              f32
      out_ref: (output_size, tile_b)   output dtype
    ReLU after every Linear except the last (matches PyTorch: relu(fc_h1),
    fc_hblock = (Linear+ReLU)*(nb_hidden_layers-1), fc_out has no ReLU).
    """

    def kernel(*refs):
        x_ref = refs[0]
        out_ref = refs[-1]
        wb_refs = refs[1:-1]
        assert len(wb_refs) == 2 * num_linear_layers

        h = x_ref[...]                                    # (in, tile_b)
        for i in range(num_linear_layers):
            w = wb_refs[2 * i][...]                       # (out, in)
            b = wb_refs[2 * i + 1][...]                   # (out, 1), f32
            # MXU matmul, f32 accumulation; bias add + ReLU on the VPU in f32.
            acc = jnp.dot(w, h, preferred_element_type=jnp.float32) + b
            if i < num_linear_layers - 1:
                h = jnp.maximum(acc, 0.0).astype(w.dtype)  # back to compute dtype
            else:
                out_ref[...] = acc.astype(out_ref.dtype)

    return kernel


def init_inverse_dynamic_params(key, nb_hidden_layers, nb_hidden_neurons,
                                input_size=INPUT_SIZE, output_size=OUTPUT_SIZE):
    """Init mimicking nn.Linear default (U(-1/sqrt(fan_in), 1/sqrt(fan_in))).

    Weights are stored PyTorch-native as (out_features, in_features);
    biases have shape (out_features, 1).  Everything f32.
    """
    dims = [input_size] + [nb_hidden_neurons] * nb_hidden_layers + [output_size]
    params = []
    for i in range(len(dims) - 1):
        fan_in, fan_out = dims[i], dims[i + 1]
        key, kw, kb = jax.random.split(key, 3)
        bound = 1.0 / math.sqrt(fan_in)
        w = jax.random.uniform(kw, (fan_out, fan_in), jnp.float32, -bound, bound)
        b = jax.random.uniform(kb, (fan_out, 1), jnp.float32, -bound, bound)
        params.append((w, b))
    return params


def _pick_tile_b(batch):
    """Lane tile: multiple of 128, as large as possible, but >=2 tiles when the
    batch is big enough so v7x can shard grid steps across its 2 TensorCores."""
    tile_b = min(MAX_TILE_B, _round_up(batch, LANE))
    if batch >= 2 * MIN_TILE_B:
        tile_b = min(tile_b, max(MIN_TILE_B, _round_up(pl.cdiv(batch, 2), LANE)))
    return tile_b


def inverse_dynamic_forward(x, params, *, compute_dtype=jnp.bfloat16):
    """Full MLP forward pass in one Pallas TPU kernel.

    x: (batch, input_size) -> returns (batch, output_size) in x.dtype.
    Internally the problem is transposed (batch on lanes) for dense layout;
    the transposes in/out are wrapper-side layout plumbing.
    """
    batch, input_size = x.shape
    num_linear = len(params)
    output_size = params[-1][0].shape[0]
    out_dtype = x.dtype

    # Lane-dense presentation: (batch, in) -> (in, batch); cast fused by XLA.
    x_t = jnp.transpose(x).astype(compute_dtype)

    tile_b = _pick_tile_b(batch)
    num_tiles = pl.cdiv(batch, tile_b)   # partial last block masked by Pallas

    kernel = _make_mlp_kernel(num_linear)

    # x is tiled along batch (lanes); weights/biases use constant index_maps so
    # their block index never changes -> DMA'd from HBM exactly once.
    flat_args = [x_t]
    in_specs = [pl.BlockSpec((input_size, tile_b), lambda i: (0, i))]
    for w, b in params:
        flat_args.append(w.astype(compute_dtype))
        flat_args.append(b)                                   # bias stays f32
        in_specs.append(pl.BlockSpec(w.shape, lambda i: (0, 0)))
        in_specs.append(pl.BlockSpec(b.shape, lambda i: (0, 0)))
    out_spec = pl.BlockSpec((output_size, tile_b), lambda i: (0, i))

    # Advisory cost estimate for XLA's scheduler.
    c_isize = np.dtype(compute_dtype).itemsize
    o_isize = np.dtype(out_dtype).itemsize
    flops = 0
    param_bytes = 0
    for w, b in params:
        o_f, i_f = w.shape
        flops += 2 * batch * i_f * o_f
        param_bytes += w.size * c_isize + b.size * 4
    bytes_accessed = (batch * input_size * c_isize
                      + batch * output_size * o_isize
                      + param_bytes)
    cost = pl.CostEstimate(flops=int(flops), transcendentals=0,
                           bytes_accessed=int(bytes_accessed))

    out_t = pl.pallas_call(
        kernel,
        grid=(num_tiles,),
        in_specs=in_specs,
        out_specs=out_spec,
        out_shape=jax.ShapeDtypeStruct((output_size, batch), out_dtype),
        compiler_params=pltpu.CompilerParams(
            dimension_semantics=("parallel",),
            vmem_limit_bytes=48 << 20),
        cost_estimate=cost,
    )(*flat_args)

    return jnp.transpose(out_t)          # (batch, output_size)


def inverse_dynamic_reference(x, params, *, compute_dtype=jnp.float32):
    """Pure-JAX reference (batch-major) mirroring the kernel's dtype flow."""
    h = x.astype(compute_dtype)
    out = None
    for i, (w, b) in enumerate(params):
        acc = jnp.dot(h, w.astype(compute_dtype).T,
                      preferred_element_type=jnp.float32) + b[:, 0]
        if i < len(params) - 1:
            h = jnp.maximum(acc, 0.0).astype(compute_dtype)
        else:
            out = acc
    return out.astype(x.dtype)


if __name__ == "__main__":
    key = jax.random.PRNGKey(0)
    k_params, k_x1, k_x2, k_x3 = jax.random.split(key, 4)

    nb_hidden_layers = 3
    nb_hidden_neurons = 32
    params = init_inverse_dynamic_params(k_params, nb_hidden_layers,
                                         nb_hidden_neurons)

    # 1) Tiny batch, f32 compute: tight structural check (bias/ReLU/orientation).
    x_small = jax.random.normal(k_x1, (8, INPUT_SIZE), jnp.float32)
    y_small = jax.block_until_ready(
        inverse_dynamic_forward(x_small, params, compute_dtype=jnp.float32))
    y_small_ref = inverse_dynamic_reference(x_small, params,
                                            compute_dtype=jnp.float32)
    assert y_small.shape == (8, OUTPUT_SIZE), y_small.shape
    assert jnp.allclose(y_small, y_small_ref, atol=2e-3, rtol=2e-3), \
        "mismatch (small batch, f32)"

    # 2) Ragged batch (not a multiple of 128): exercises masked partial block.
    x_ragged = jax.random.normal(k_x2, (50, INPUT_SIZE), jnp.float32)
    y_ragged = jax.block_until_ready(
        inverse_dynamic_forward(x_ragged, params, compute_dtype=jnp.float32))
    y_ragged_ref = inverse_dynamic_reference(x_ragged, params,
                                             compute_dtype=jnp.float32)
    assert y_ragged.shape == (50, OUTPUT_SIZE), y_ragged.shape
    assert jnp.allclose(y_ragged, y_ragged_ref, atol=2e-3, rtol=2e-3), \
        "mismatch (ragged batch, f32)"

    # 3) Multi-tile grid + ragged tail, default bf16 compute path.
    x_big = jax.random.normal(k_x3, (3000, INPUT_SIZE), jnp.float32)
    y_big = jax.block_until_ready(inverse_dynamic_forward(x_big, params))
    y_big_ref = inverse_dynamic_reference(x_big, params,
                                          compute_dtype=jnp.bfloat16)
    assert y_big.shape == (3000, OUTPUT_SIZE), y_big.shape
    assert jnp.allclose(y_big, y_big_ref, atol=2e-2, rtol=2e-2), \
        "mismatch (multi-tile batch, bf16)"

    print("KERNEL_OK")
</pallas_src>

<mosaic_0001>
module attributes {stable_mosaic.version = 11 : i64} {
  func.func @kernel(%arg0: i32, %arg1: memref<21x128xf32, #tpu.memory_space<vmem>>, %arg2: memref<32x21xf32, #tpu.memory_space<vmem>>, %arg3: memref<32x1xf32, #tpu.memory_space<vmem>>, %arg4: memref<32x32xf32, #tpu.memory_space<vmem>>, %arg5: memref<32x1xf32, #tpu.memory_space<vmem>>, %arg6: memref<32x32xf32, #tpu.memory_space<vmem>>, %arg7: memref<32x1xf32, #tpu.memory_space<vmem>>, %arg8: memref<7x32xf32, #tpu.memory_space<vmem>>, %arg9: memref<7x1xf32, #tpu.memory_space<vmem>>, %arg10: memref<7x128xf32, #tpu.memory_space<vmem>>) attributes {dimension_semantics = [#tpu.dimension_semantics<parallel>], iteration_bounds = array<i64: 1>, scalar_prefetch = 0 : i64, scratch_operands = 0 : i64, tpu.core_type = #tpu.core_type<tc>, window_params = [{transform_indices = @transform_0, window_bounds = array<i64: 21, 128>}, {pipeline_mode = #tpu.pipeline_mode<synchronous>, transform_indices = @transform_1, window_bounds = array<i64: 32, 21>}, {pipeline_mode = #tpu.pipeline_mode<synchronous>, transform_indices = @transform_2, window_bounds = array<i64: 32, 1>}, {pipeline_mode = #tpu.pipeline_mode<synchronous>, transform_indices = @transform_3, window_bounds = array<i64: 32, 32>}, {pipeline_mode = #tpu.pipeline_mode<synchronous>, transform_indices = @transform_4, window_bounds = array<i64: 32, 1>}, {pipeline_mode = #tpu.pipeline_mode<synchronous>, transform_indices = @transform_5, window_bounds = array<i64: 32, 32>}, {pipeline_mode = #tpu.pipeline_mode<synchronous>, transform_indices = @transform_6, window_bounds = array<i64: 32, 1>}, {pipeline_mode = #tpu.pipeline_mode<synchronous>, transform_indices = @transform_7, window_bounds = array<i64: 7, 32>}, {pipeline_mode = #tpu.pipeline_mode<synchronous>, transform_indices = @transform_8, window_bounds = array<i64: 7, 1>}, {transform_indices = @transform_9, window_bounds = array<i64: 7, 128>}]} {
    %c0 = arith.constant 0 : index
    %c0_0 = arith.constant 0 : index
    %0 = vector.load %arg1[%c0, %c0_0] : memref<21x128xf32, #tpu.memory_space<vmem>>, vector<21x128xf32>
    %c0_1 = arith.constant 0 : index
    %c0_2 = arith.constant 0 : index
    %1 = vector.load %arg2[%c0_1, %c0_2] : memref<32x21xf32, #tpu.memory_space<vmem>>, vector<32x21xf32>
    %c0_3 = arith.constant 0 : index
    %c0_4 = arith.constant 0 : index
    %2 = vector.load %arg3[%c0_3, %c0_4] : memref<32x1xf32, #tpu.memory_space<vmem>>, vector<32x1xf32>
    %cst = arith.constant dense<0.000000e+00> : vector<32x128xf32>
    %3 = tpu.matmul %1, %0, %cst {dimension_numbers = #tpu.dot_dimension_numbers<[1], [0], [0], [1], [0, 0, 1, 1], [], []>} : vector<32x21xf32>, vector<21x128xf32>, vector<32x128xf32> -> vector<32x128xf32>
    %4 = vector.broadcast %2 : vector<32x1xf32> to vector<32x128xf32>
    %5 = arith.addf %3, %4 : vector<32x128xf32>
    %cst_5 = arith.constant 0.000000e+00 : f32
    %6 = vector.broadcast %cst_5 : f32 to vector<32x128xf32>
    %7 = arith.maximumf %5, %6 : vector<32x128xf32>
    %c0_6 = arith.constant 0 : index
    %c0_7 = arith.constant 0 : index
    %8 = vector.load %arg4[%c0_6, %c0_7] : memref<32x32xf32, #tpu.memory_space<vmem>>, vector<32x32xf32>
    %c0_8 = arith.constant 0 : index
    %c0_9 = arith.constant 0 : index
    %9 = vector.load %arg5[%c0_8, %c0_9] : memref<32x1xf32, #tpu.memory_space<vmem>>, vector<32x1xf32>
    %cst_10 = arith.constant dense<0.000000e+00> : vector<32x128xf32>
    %10 = tpu.matmul %8, %7, %cst_10 {dimension_numbers = #tpu.dot_dimension_numbers<[1], [0], [0], [1], [0, 0, 1, 1], [], []>} : vector<32x32xf32>, vector<32x128xf32>, vector<32x128xf32> -> vector<32x128xf32>
    %11 = vector.broadcast %9 : vector<32x1xf32> to vector<32x128xf32>
    %12 = arith.addf %10, %11 : vector<32x128xf32>
    %cst_11 = arith.constant 0.000000e+00 : f32
    %13 = vector.broadcast %cst_11 : f32 to vector<32x128xf32>
    %14 = arith.maximumf %12, %13 : vector<32x128xf32>
    %c0_12 = arith.constant 0 : index
    %c0_13 = arith.constant 0 : index
    %15 = vector.load %arg6[%c0_12, %c0_13] : memref<32x32xf32, #tpu.memory_space<vmem>>, vector<32x32xf32>
    %c0_14 = arith.constant 0 : index
    %c0_15 = arith.constant 0 : index
    %16 = vector.load %arg7[%c0_14, %c0_15] : memref<32x1xf32, #tpu.memory_space<vmem>>, vector<32x1xf32>
    %cst_16 = arith.constant dense<0.000000e+00> : vector<32x128xf32>
    %17 = tpu.matmul %15, %14, %cst_16 {dimension_numbers = #tpu.dot_dimension_numbers<[1], [0], [0], [1], [0, 0, 1, 1], [], []>} : vector<32x32xf32>, vector<32x128xf32>, vector<32x128xf32> -> vector<32x128xf32>
    %18 = vector.broadcast %16 : vector<32x1xf32> to vector<32x128xf32>
    %19 = arith.addf %17, %18 : vector<32x128xf32>
    %cst_17 = arith.constant 0.000000e+00 : f32
    %20 = vector.broadcast %cst_17 : f32 to vector<32x128xf32>
    %21 = arith.maximumf %19, %20 : vector<32x128xf32>
    %c0_18 = arith.constant 0 : index
    %c0_19 = arith.constant 0 : index
    %22 = vector.load %arg8[%c0_18, %c0_19] : memref<7x32xf32, #tpu.memory_space<vmem>>, vector<7x32xf32>
    %c0_20 = arith.constant 0 : index
    %c0_21 = arith.constant 0 : index
    %23 = vector.load %arg9[%c0_20, %c0_21] : memref<7x1xf32, #tpu.memory_space<vmem>>, vector<7x1xf32>
    %cst_22 = arith.constant dense<0.000000e+00> : vector<7x128xf32>
    %24 = tpu.matmul %22, %21, %cst_22 {dimension_numbers = #tpu.dot_dimension_numbers<[1], [0], [0], [1], [0, 0, 1, 1], [], []>} : vector<7x32xf32>, vector<32x128xf32>, vector<7x128xf32> -> vector<7x128xf32>
    %25 = vector.broadcast %23 : vector<7x1xf32> to vector<7x128xf32>
    %26 = arith.addf %24, %25 : vector<7x128xf32>
    %c0_23 = arith.constant 0 : index
    %c0_24 = arith.constant 0 : index
    %27 = vector.load %arg10[%c0_23, %c0_24] : memref<7x128xf32, #tpu.memory_space<vmem>>, vector<7x128xf32>
    tpu.vector_store %arg10[%c0_23, %c0_24], %26 {strides = array<i32>} : memref<7x128xf32, #tpu.memory_space<vmem>>, vector<7x128xf32>,
    return
  }
  func.func @transform_0(%arg0: i32) -> (i32, i32) {
    %c0_i32 = arith.constant 0 : i32
    %c0_i32_0 = arith.constant 0 : i32
    return %c0_i32, %arg0 : i32, i32
  }
  func.func @transform_1(%arg0: i32) -> (i32, i32) {
    %c0_i32 = arith.constant 0 : i32
    %c0_i32_0 = arith.constant 0 : i32
    %c0_i32_1 = arith.constant 0 : i32
    return %c0_i32, %c0_i32_0 : i32, i32
  }
  func.func @transform_2(%arg0: i32) -> (i32, i32) {
    %c0_i32 = arith.constant 0 : i32
    %c0_i32_0 = arith.constant 0 : i32
    %c0_i32_1 = arith.constant 0 : i32
    return %c0_i32, %c0_i32_0 : i32, i32
  }
  func.func @transform_3(%arg0: i32) -> (i32, i32) {
    %c0_i32 = arith.constant 0 : i32
    %c0_i32_0 = arith.constant 0 : i32
    %c0_i32_1 = arith.constant 0 : i32
    return %c0_i32, %c0_i32_0 : i32, i32
  }
  func.func @transform_4(%arg0: i32) -> (i32, i32) {
    %c0_i32 = arith.constant 0 : i32
    %c0_i32_0 = arith.constant 0 : i32
    %c0_i32_1 = arith.constant 0 : i32
    return %c0_i32, %c0_i32_0 : i32, i32
  }
  func.func @transform_5(%arg0: i32) -> (i32, i32) {
    %c0_i32 = arith.constant 0 : i32
    %c0_i32_0 = arith.constant 0 : i32
    %c0_i32_1 = arith.constant 0 : i32
    return %c0_i32, %c0_i32_0 : i32, i32
  }
  func.func @transform_6(%arg0: i32) -> (i32, i32) {
    %c0_i32 = arith.constant 0 : i32
    %c0_i32_0 = arith.constant 0 : i32
    %c0_i32_1 = arith.constant 0 : i32
    return %c0_i32, %c0_i32_0 : i32, i32
  }
  func.func @transform_7(%arg0: i32) -> (i32, i32) {
    %c0_i32 = arith.constant 0 : i32
    %c0_i32_0 = arith.constant 0 : i32
    %c0_i32_1 = arith.constant 0 : i32
    return %c0_i32, %c0_i32_0 : i32, i32
  }
  func.func @transform_8(%arg0: i32) -> (i32, i32) {
    %c0_i32 = arith.constant 0 : i32
    %c0_i32_0 = arith.constant 0 : i32
    %c0_i32_1 = arith.constant 0 : i32
    return %c0_i32, %c0_i32_0 : i32, i32
  }
  func.func @transform_9(%arg0: i32) -> (i32, i32) {
    %c0_i32 = arith.constant 0 : i32
    %c0_i32_0 = arith.constant 0 : i32
    return %c0_i32, %arg0 : i32, i32
  }
}

</mosaic_0001>

<llo_original>
// kernel: tpu_custom_call.1
$region0: #{tpu_custom_call.1}
  #allocation0 [shape = 'u32[]', space=smem, size = 0x4, offset = 0x4, fixed_abs, tag = 'smem constant byte address 0x4 - core index']
  #allocation1 [shape = 'u32[144,128]{1,0:T(1,128)}', space=vmem, size = 0x12000, scoped, tag = 'internal scratch']
  %s0 = inlined_call_operand.vmem [shape: f32[21,8], index: 0, kind: input, shape index: {}]
  %s1 = inlined_call_operand.vmem [shape: f32[32,21], index: 1, kind: input, shape index: {}]
  %s2 = inlined_call_operand.vmem [shape: f32[32,1], index: 2, kind: input, shape index: {}]
  %s3 = inlined_call_operand.vmem [shape: f32[32,32], index: 3, kind: input, shape index: {}]
  %s4 = inlined_call_operand.vmem [shape: f32[32,1], index: 4, kind: input, shape index: {}]
  %s5 = inlined_call_operand.vmem [shape: f32[32,32], index: 5, kind: input, shape index: {}]
  %s6 = inlined_call_operand.vmem [shape: f32[32,1], index: 6, kind: input, shape index: {}]
  %s7 = inlined_call_operand.vmem [shape: f32[7,32], index: 7, kind: input, shape index: {}]
  %s8 = inlined_call_operand.vmem [shape: f32[7,1], index: 8, kind: input, shape index: {}]
  %s9 = inlined_call_operand.hbm [shape: f32[7,8], index: 9, kind: output, shape index: {}]
  %s10 = sld [smem:[#allocation0]]
  $region46: #{tpu_custom_call.1} parent=0
    _
  %s12 = ssub.s32 1, %s10
  %s13 = scalar_select 0, %s12, %s10
  $region1: #{tpu_custom_call.1} parent=0
    #allocation2 [shape = 'u8[4096]{0}', space=vmem, size = 0x1000, scoped, tag = 'output window, operand 0, single buffered']
    #allocation3 [shape = 's32[1]{0}', space=sflag, size = 0x4, scoped, tag = 'scoped memory for tpu_custom_call.1']
    %14 = vsyncpa [#allocation3], 0
    // Predicated region
    $region2: #{tpu_custom_call.1} parent=1 // pred_check
      _
    $region3: #{tpu_custom_call.1} parent=1 // pred_check_branch
      %16 = sbr.rel (0) target = $region5
    $region4: #{tpu_custom_call.1} parent=1 // pred_region
      _
    $region5: #{tpu_custom_call.1} parent=1 // pred_fallthru
      _
    // Predicated region
    $region6: #{tpu_custom_call.1} parent=1 // pred_check
      _
    $region7: #{tpu_custom_call.1} parent=1 // pred_check_branch
      %18 = sbr.rel (0) target = $region9
    $region8: #{tpu_custom_call.1} parent=1 // pred_region
      _
    $region9: #{tpu_custom_call.1} parent=1 // pred_fallthru
      _
    // Predicated region
    $region10: #{tpu_custom_call.1} parent=1 // pred_check
      _
    $region11: #{tpu_custom_call.1} parent=1 // pred_check_branch
      %20 = sbr.rel (0) target = $region13
    $region12: #{tpu_custom_call.1} parent=1 // pred_region
      _
    $region13: #{tpu_custom_call.1} parent=1 // pred_fallthru
      _
    // Predicated region
    $region14: #{tpu_custom_call.1} parent=1 // pred_check
      _
    $region15: #{tpu_custom_call.1} parent=1 // pred_check_branch
      %22 = sbr.rel (0) target = $region17
    $region16: #{tpu_custom_call.1} parent=1 // pred_region
      _
    $region17: #{tpu_custom_call.1} parent=1 // pred_fallthru
      _
    // Predicated region
    $region18: #{tpu_custom_call.1} parent=1 // pred_check
      _
    $region19: #{tpu_custom_call.1} parent=1 // pred_check_branch
      %24 = sbr.rel (0) target = $region21
    $region20: #{tpu_custom_call.1} parent=1 // pred_region
      _
    $region21: #{tpu_custom_call.1} parent=1 // pred_fallthru
      _
    // Predicated region
    $region22: #{tpu_custom_call.1} parent=1 // pred_check
      _
    $region23: #{tpu_custom_call.1} parent=1 // pred_check_branch
      %26 = sbr.rel (0) target = $region25
    $region24: #{tpu_custom_call.1} parent=1 // pred_region
      _
    $region25: #{tpu_custom_call.1} parent=1 // pred_fallthru
      _
    // Predicated region
    $region26: #{tpu_custom_call.1} parent=1 // pred_check
      _
    $region27: #{tpu_custom_call.1} parent=1 // pred_check_branch
      %28 = sbr.rel (0) target = $region29
    $region28: #{tpu_custom_call.1} parent=1 // pred_region
      _
    $region29: #{tpu_custom_call.1} parent=1 // pred_fallthru
      _
    // Predicated region
    $region30: #{tpu_custom_call.1} parent=1 // pred_check
      _
    $region31: #{tpu_custom_call.1} parent=1 // pred_check_branch
      %30 = sbr.rel (0) target = $region33
    $region32: #{tpu_custom_call.1} parent=1 // pred_region
      _
    $region33: #{tpu_custom_call.1} parent=1 // pred_fallthru
      _
    // Predicated region
    $region34: #{tpu_custom_call.1} parent=1 // pred_check
      _
    $region35: #{tpu_custom_call.1} parent=1 // pred_check_branch
      %32 = sbr.rel (0) target = $region37
    $region36: #{tpu_custom_call.1} parent=1 // pred_region
      _
    $region37: #{tpu_custom_call.1} parent=1 // pred_fallthru
      _
    %v33 = vld [vmem:[%s0] sm:$0xff]
    %v34 = vld [vmem:[%s0 + $0x8] sm:$0xff]
    %v35 = vld [vmem:[%s0 + $0x10] sm:$0x1f]
    %v36 = vld [vmem:[%s1] sm:$0xff]
    %v37 = vld [vmem:[%s1 + $0x8] sm:$0xff]
    %v38 = vld [vmem:[%s1 + $0x10] sm:$0xff]
    %v39 = vld [vmem:[%s1 + $0x18] sm:$0xff]
    %v40 = vld [vmem:[%s2] sm:$0xff]
    %v41 = vld [vmem:[%s2 + $0x8] sm:$0xff]
    %v42 = vld [vmem:[%s2 + $0x10] sm:$0xff]
    %v43 = vld [vmem:[%s2 + $0x18] sm:$0xff]
    %45 = vset.pattern.permute.xlu0 0
    %46 = vperm.xlu0 %45, %v40
    %v47 = vpop.permute.xlu0 %46
    %50 = vset.pattern.permute.xlu0 0
    %51 = vperm.xlu0 %50, %v41
    %v52 = vpop.permute.xlu0 %51
    %55 = vset.pattern.permute.xlu0 0
    %56 = vperm.xlu0 %55, %v42
    %v57 = vpop.permute.xlu0 %56
    %60 = vset.pattern.permute.xlu0 0
    %61 = vperm.xlu0 %60, %v43
    %v62 = vpop.permute.xlu0 %61
    %vm64 = vcmask 171008
    %v66 = vsel %vm64, %v36, 0
    %v69 = vsel %vm64, %v37, 0
    %v72 = vsel %vm64, %v38, 0
    %v75 = vsel %vm64, %v39, 0
    %vm77 = vcmask 1044480
    %v79 = vsel %vm77, %v35, 0
    %81 = vmatprep.subr.mxu0 0.0
    %82 = vmatpush1.msra.mxu0 %v33
    %83 = vmatprep.subr.mxu0 0.0
    %84 = vmatpush1.msra.mxu0 %v34
    %85 = vmatprep.subr.mxu0 0.0
    %86 = vmatpush1.msra.mxu0 %v79
    %87 = vmatprep.subr.mxu0 0.0
    %88 = vmatpush1.msra.mxu0 0.0
    %89 = vmatprep.subr.mxu0 0.0
    %90 = vmatpush1.msra.mxu0 0.0
    %91 = vmatprep.subr.mxu0 0.0
    %92 = vmatpush1.msra.mxu0 0.0
    %93 = vmatprep.subr.mxu0 0.0
    %94 = vmatpush1.msra.mxu0 0.0
    %95 = vmatprep.subr.mxu0 0.0
    %96 = vmatpush1.msra.mxu0 0.0
    %97 = vmatprep.subr.mxu0 0.0
    %98 = vmatpush1.msra.mxu0 0.0
    %99 = vmatprep.subr.mxu0 0.0
    %100 = vmatpush1.msra.mxu0 0.0
    %101 = vmatprep.subr.mxu0 0.0
    %102 = vmatpush1.msra.mxu0 0.0
    %103 = vmatprep.subr.mxu0 0.0
    %104 = vmatpush1.msra.mxu0 0.0
    %105 = vmatprep.subr.mxu0 0.0
    %106 = vmatpush1.msra.mxu0 0.0
    %107 = vmatprep.subr.mxu0 0.0
    %108 = vmatpush1.msra.mxu0 0.0
    %109 = vmatprep.subr.mxu0 0.0
    %110 = vmatpush1.msra.mxu0 0.0
    %111 = vmatprep.subr.mxu0 0.0
    %112 = vmatpush1.msra.mxu0 0.0
    %113 = vmatprep.subr.mxu0 0.0
    %114 = vmatpush1.msra.mxu0 0.0
    %115 = vmatprep.subr.mxu0 0.0
    %116 = vmatpush1.msra.mxu0 0.0
    %117 = vmatprep.subr.mxu0 0.0
    %118 = vmatpush1.msra.mxu0 0.0
    %119 = vmatprep.subr.mxu0 0.0
    %120 = vmatpush1.msra.mxu0 0.0
    %121 = vmatprep.subr.mxu0 0.0
    %122 = vmatpush1.msra.mxu0 0.0
    %123 = vmatprep.subr.mxu0 0.0
    %124 = vmatpush1.msra.mxu0 0.0
    %125 = vmatprep.subr.mxu0 0.0
    %126 = vmatpush1.msra.mxu0 0.0
    %127 = vmatprep.subr.mxu0 0.0
    %128 = vmatpush1.msra.mxu0 0.0
    %129 = vmatprep.subr.mxu0 0.0
    %130 = vmatpush1.msra.mxu0 0.0
    %131 = vmatprep.subr.mxu0 0.0
    %132 = vmatpush1.msra.mxu0 0.0
    %133 = vmatprep.subr.mxu0 0.0
    %134 = vmatpush1.msra.mxu0 0.0
    %135 = vmatprep.subr.mxu0 0.0
    %136 = vmatpush1.msra.mxu0 0.0
    %137 = vmatprep.subr.mxu0 0.0
    %138 = vmatpush1.msra.mxu0 0.0
    %139 = vmatprep.subr.mxu0 0.0
    %140 = vmatpush1.msra.mxu0 0.0
    %141 = vmatprep.subr.mxu0 0.0
    %142 = vmatpush1.msra.mxu0 0.0
    %143 = vmatprep.subr.mxu0 0.0
    %144 = vmatpush1.msra.mxu0 0.0
    %145 = vmatprep.mubr.f32.mxu0 0.0
    %146 = vmatmul.mubr.f32.gmra.mrb[0].mxu0 %v66
    %v147 = vpop.f32.mrb[0].mxu0
    %v148 = vadd.f32 %v47, %v147
    %v149 = vpop.f32.mrb[0].mxu0
    %150 = vmatprep.mubr.f32.mxu0 0.0
    %151 = vmatmul.mubr.f32.gmra.mrb[0].mxu0 %v69
    %v152 = vpop.f32.mrb[0].mxu0
    %v153 = vadd.f32 %v52, %v152
    %v154 = vpop.f32.mrb[0].mxu0
    %155 = vmatprep.mubr.f32.mxu0 0.0
    %156 = vmatmul.mubr.f32.gmra.mrb[0].mxu0 %v72
    %v157 = vpop.f32.mrb[0].mxu0
    %v158 = vadd.f32 %v57, %v157
    %v159 = vpop.f32.mrb[0].mxu0
    %160 = vmatprep.mubr.f32.mxu0 0.0
    %161 = vmatmul.mubr.f32.gmra.mrb[0].mxu0 %v75
    %v162 = vpop.f32.mrb[0].mxu0
    %v163 = vadd.f32 %v62, %v162
    %v164 = vpop.f32.mrb[0].mxu0
    %165 = vdwg.mxu0
    %v166 = vmax.f32 %v148, 0.0
    %v167 = vmax.f32 %v153, 0.0
    %v168 = vmax.f32 %v158, 0.0
    %v169 = vmax.f32 %v163, 0.0
    %v170 = vld [vmem:[%s3] sm:$0xff]
    %v171 = vld [vmem:[%s3 + $0x8] sm:$0xff]
    %v172 = vld [vmem:[%s3 + $0x10] sm:$0xff]
    %v173 = vld [vmem:[%s3 + $0x18] sm:$0xff]
    %v174 = vld [vmem:[%s4] sm:$0xff]
    %v175 = vld [vmem:[%s4 + $0x8] sm:$0xff]
    %v176 = vld [vmem:[%s4 + $0x10] sm:$0xff]
    %v177 = vld [vmem:[%s4 + $0x18] sm:$0xff]
    %179 = vset.pattern.permute.xlu0 0
    %180 = vperm.xlu0 %179, %v174
    %v181 = vpop.permute.xlu0 %180
    %184 = vset.pattern.permute.xlu0 0
    %185 = vperm.xlu0 %184, %v175
    %v186 = vpop.permute.xlu0 %185
    %189 = vset.pattern.permute.xlu0 0
    %190 = vperm.xlu0 %189, %v176
    %v191 = vpop.permute.xlu0 %190
    %194 = vset.pattern.permute.xlu0 0
    %195 = vperm.xlu0 %194, %v177
    %v196 = vpop.permute.xlu0 %195
    %vm198 = vcmask 261120
    %v200 = vsel %vm198, %v170, 0
    %v203 = vsel %vm198, %v171, 0
    %v206 = vsel %vm198, %v172, 0
    %v209 = vsel %vm198, %v173, 0
    %211 = vmatprep.subr.mxu0 0.0
    %212 = vmatpush1.msra.mxu0 %v166
    %213 = vmatprep.subr.mxu0 0.0
    %214 = vmatpush1.msra.mxu0 %v167
    %215 = vmatprep.subr.mxu0 0.0
    %216 = vmatpush1.msra.mxu0 %v168
    %217 = vmatprep.subr.mxu0 0.0
    %218 = vmatpush1.msra.mxu0 %v169
    %219 = vmatprep.subr.mxu0 0.0
    %220 = vmatpush1.msra.mxu0 0.0
    %221 = vmatprep.subr.mxu0 0.0
    %222 = vmatpush1.msra.mxu0 0.0
    %223 = vmatprep.subr.mxu0 0.0
    %224 = vmatpush1.msra.mxu0 0.0
    %225 = vmatprep.subr.mxu0 0.0
    %226 = vmatpush1.msra.mxu0 0.0
    %227 = vmatprep.subr.mxu0 0.0
    %228 = vmatpush1.msra.mxu0 0.0
    %229 = vmatprep.subr.mxu0 0.0
    %230 = vmatpush1.msra.mxu0 0.0
    %231 = vmatprep.subr.mxu0 0.0
    %232 = vmatpush1.msra.mxu0 0.0
    %233 = vmatprep.subr.mxu0 0.0
    %234 = vmatpush1.msra.mxu0 0.0
    %235 = vmatprep.subr.mxu0 0.0
    %236 = vmatpush1.msra.mxu0 0.0
    %237 = vmatprep.subr.mxu0 0.0
    %238 = vmatpush1.msra.mxu0 0.0
    %239 = vmatprep.subr.mxu0 0.0
    %240 = vmatpush1.msra.mxu0 0.0
    %241 = vmatprep.subr.mxu0 0.0
    %242 = vmatpush1.msra.mxu0 0.0
    %243 = vmatprep.subr.mxu0 0.0
    %244 = vmatpush1.msra.mxu0 0.0
    %245 = vmatprep.subr.mxu0 0.0
    %246 = vmatpush1.msra.mxu0 0.0
    %247 = vmatprep.subr.mxu0 0.0
    %248 = vmatpush1.msra.mxu0 0.0
    %249 = vmatprep.subr.mxu0 0.0
    %250 = vmatpush1.msra.mxu0 0.0
    %251 = vmatprep.subr.mxu0 0.0
    %252 = vmatpush1.msra.mxu0 0.0
    %253 = vmatprep.subr.mxu0 0.0
    %254 = vmatpush1.msra.mxu0 0.0
    %255 = vmatprep.subr.mxu0 0.0
    %256 = vmatpush1.msra.mxu0 0.0
    %257 = vmatprep.subr.mxu0 0.0
    %258 = vmatpush1.msra.mxu0 0.0
    %259 = vmatprep.subr.mxu0 0.0
    %260 = vmatpush1.msra.mxu0 0.0
    %261 = vmatprep.subr.mxu0 0.0
    %262 = vmatpush1.msra.mxu0 0.0
    %263 = vmatprep.subr.mxu0 0.0
    %264 = vmatpush1.msra.mxu0 0.0
    %265 = vmatprep.subr.mxu0 0.0
    %266 = vmatpush1.msra.mxu0 0.0
    %267 = vmatprep.subr.mxu0 0.0
    %268 = vmatpush1.msra.mxu0 0.0
    %269 = vmatprep.subr.mxu0 0.0
    %270 = vmatpush1.msra.mxu0 0.0
    %271 = vmatprep.subr.mxu0 0.0
    %272 = vmatpush1.msra.mxu0 0.0
    %273 = vmatprep.subr.mxu0 0.0
    %274 = vmatpush1.msra.mxu0 0.0
    %275 = vmatprep.mubr.f32.mxu0 0.0
    %276 = vmatmul.mubr.f32.gmra.mrb[0].mxu0 %v200
    %v277 = vpop.f32.mrb[0].mxu0
    %v278 = vadd.f32 %v181, %v277
    %v279 = vpop.f32.mrb[0].mxu0
    %280 = vmatprep.mubr.f32.mxu0 0.0
    %281 = vmatmul.mubr.f32.gmra.mrb[0].mxu0 %v203
    %v282 = vpop.f32.mrb[0].mxu0
    %v283 = vadd.f32 %v186, %v282
    %v284 = vpop.f32.mrb[0].mxu0
    %285 = vmatprep.mubr.f32.mxu0 0.0
    %286 = vmatmul.mubr.f32.gmra.mrb[0].mxu0 %v206
    %v287 = vpop.f32.mrb[0].mxu0
    %v288 = vadd.f32 %v191, %v287
    %v289 = vpop.f32.mrb[0].mxu0
    %290 = vmatprep.mubr.f32.mxu0 0.0
    %291 = vmatmul.mubr.f32.gmra.mrb[0].mxu0 %v209
    %v292 = vpop.f32.mrb[0].mxu0
    %v293 = vadd.f32 %v196, %v292
    %v294 = vpop.f32.mrb[0].mxu0
    %295 = vdwg.mxu0
    %v296 = vmax.f32 %v278, 0.0
    %v297 = vmax.f32 %v283, 0.0
    %v298 = vmax.f32 %v288, 0.0
    %v299 = vmax.f32 %v293, 0.0
    %v300 = vld [vmem:[%s5] sm:$0xff]
    %v301 = vld [vmem:[%s5 + $0x8] sm:$0xff]
    %v302 = vld [vmem:[%s5 + $0x10] sm:$0xff]
    %v303 = vld [vmem:[%s5 + $0x18] sm:$0xff]
    %v304 = vld [vmem:[%s6] sm:$0xff]
    %v305 = vld [vmem:[%s6 + $0x8] sm:$0xff]
    %v306 = vld [vmem:[%s6 + $0x10] sm:$0xff]
    %v307 = vld [vmem:[%s6 + $0x18] sm:$0xff]
    %309 = vset.pattern.permute.xlu0 0
    %310 = vperm.xlu0 %309, %v304
    %v311 = vpop.permute.xlu0 %310
    %314 = vset.pattern.permute.xlu0 0
    %315 = vperm.xlu0 %314, %v305
    %v316 = vpop.permute.xlu0 %315
    %319 = vset.pattern.permute.xlu0 0
    %320 = vperm.xlu0 %319, %v306
    %v321 = vpop.permute.xlu0 %320
    %324 = vset.pattern.permute.xlu0 0
    %325 = vperm.xlu0 %324, %v307
    %v326 = vpop.permute.xlu0 %325
    %v329 = vsel %vm198, %v300, 0
    %v332 = vsel %vm198, %v301, 0
    %v335 = vsel %vm198, %v302, 0
    %v338 = vsel %vm198, %v303, 0
    %340 = vmatprep.subr.mxu0 0.0
    %341 = vmatpush1.msra.mxu0 %v296
    %342 = vmatprep.subr.mxu0 0.0
    %343 = vmatpush1.msra.mxu0 %v297
    %344 = vmatprep.subr.mxu0 0.0
    %345 = vmatpush1.msra.mxu0 %v298
    %346 = vmatprep.subr.mxu0 0.0
    %347 = vmatpush1.msra.mxu0 %v299
    %348 = vmatprep.subr.mxu0 0.0
    %349 = vmatpush1.msra.mxu0 0.0
    %350 = vmatprep.subr.mxu0 0.0
    %351 = vmatpush1.msra.mxu0 0.0
    %352 = vmatprep.subr.mxu0 0.0
    %353 = vmatpush1.msra.mxu0 0.0
    %354 = vmatprep.subr.mxu0 0.0
    %355 = vmatpush1.msra.mxu0 0.0
    %356 = vmatprep.subr.mxu0 0.0
    %357 = vmatpush1.msra.mxu0 0.0
    %358 = vmatprep.subr.mxu0 0.0
    %359 = vmatpush1.msra.mxu0 0.0
    %360 = vmatprep.subr.mxu0 0.0
    %361 = vmatpush1.msra.mxu0 0.0
    %362 = vmatprep.subr.mxu0 0.0
    %363 = vmatpush1.msra.mxu0 0.0
    %364 = vmatprep.subr.mxu0 0.0
    %365 = vmatpush1.msra.mxu0 0.0
    %366 = vmatprep.subr.mxu0 0.0
    %367 = vmatpush1.msra.mxu0 0.0
    %368 = vmatprep.subr.mxu0 0.0
    %369 = vmatpush1.msra.mxu0 0.0
    %370 = vmatprep.subr.mxu0 0.0
    %371 = vmatpush1.msra.mxu0 0.0
    %372 = vmatprep.subr.mxu0 0.0
    %373 = vmatpush1.msra.mxu0 0.0
    %374 = vmatprep.subr.mxu0 0.0
    %375 = vmatpush1.msra.mxu0 0.0
    %376 = vmatprep.subr.mxu0 0.0
    %377 = vmatpush1.msra.mxu0 0.0
    %378 = vmatprep.subr.mxu0 0.0
    %379 = vmatpush1.msra.mxu0 0.0
    %380 = vmatprep.subr.mxu0 0.0
    %381 = vmatpush1.msra.mxu0 0.0
    %382 = vmatprep.subr.mxu0 0.0
    %383 = vmatpush1.msra.mxu0 0.0
    %384 = vmatprep.subr.mxu0 0.0
    %385 = vmatpush1.msra.mxu0 0.0
    %386 = vmatprep.subr.mxu0 0.0
    %387 = vmatpush1.msra.mxu0 0.0
    %388 = vmatprep.subr.mxu0 0.0
    %389 = vmatpush1.msra.mxu0 0.0
    %390 = vmatprep.subr.mxu0 0.0
    %391 = vmatpush1.msra.mxu0 0.0
    %392 = vmatprep.subr.mxu0 0.0
    %393 = vmatpush1.msra.mxu0 0.0
    %394 = vmatprep.subr.mxu0 0.0
    %395 = vmatpush1.msra.mxu0 0.0
    %396 = vmatprep.subr.mxu0 0.0
    %397 = vmatpush1.msra.mxu0 0.0
    %398 = vmatprep.subr.mxu0 0.0
    %399 = vmatpush1.msra.mxu0 0.0
    %400 = vmatprep.subr.mxu0 0.0
    %401 = vmatpush1.msra.mxu0 0.0
    %402 = vmatprep.subr.mxu0 0.0
    %403 = vmatpush1.msra.mxu0 0.0
    %404 = vmatprep.mubr.f32.mxu0 0.0
    %405 = vmatmul.mubr.f32.gmra.mrb[0].mxu0 %v329
    %v406 = vpop.f32.mrb[0].mxu0
    %v407 = vadd.f32 %v311, %v406
    %v408 = vpop.f32.mrb[0].mxu0
    %409 = vmatprep.mubr.f32.mxu0 0.0
    %410 = vmatmul.mubr.f32.gmra.mrb[0].mxu0 %v332
    %v411 = vpop.f32.mrb[0].mxu0
    %v412 = vadd.f32 %v316, %v411
    %v413 = vpop.f32.mrb[0].mxu0
    %414 = vmatprep.mubr.f32.mxu0 0.0
    %415 = vmatmul.mubr.f32.gmra.mrb[0].mxu0 %v335
    %v416 = vpop.f32.mrb[0].mxu0
    %v417 = vadd.f32 %v321, %v416
    %v418 = vpop.f32.mrb[0].mxu0
    %419 = vmatprep.mubr.f32.mxu0 0.0
    %420 = vmatmul.mubr.f32.gmra.mrb[0].mxu0 %v338
    %v421 = vpop.f32.mrb[0].mxu0
    %v422 = vadd.f32 %v326, %v421
    %v423 = vpop.f32.mrb[0].mxu0
    %424 = vdwg.mxu0
    %v425 = vmax.f32 %v407, 0.0
    %v426 = vmax.f32 %v412, 0.0
    %v427 = vmax.f32 %v417, 0.0
    %v428 = vmax.f32 %v422, 0.0
    %v429 = vld [vmem:[%s7] sm:$0x7f]
    %v430 = vld [vmem:[%s8] sm:$0x7f]
    %432 = vset.pattern.permute.xlu0 0
    %433 = vperm.xlu0 %432, %v430
    %v434 = vpop.permute.xlu0 %433
    %v437 = vsel %vm198, %v429, 0
    %439 = vmatprep.subr.mxu0 0.0
    %440 = vmatpush1.msra.mxu0 %v425
    %441 = vmatprep.subr.mxu0 0.0
    %442 = vmatpush1.msra.mxu0 %v426
    %443 = vmatprep.subr.mxu0 0.0
    %444 = vmatpush1.msra.mxu0 %v427
    %445 = vmatprep.subr.mxu0 0.0
    %446 = vmatpush1.msra.mxu0 %v428
    %447 = vmatprep.subr.mxu0 0.0
    %448 = vmatpush1.msra.mxu0 0.0
    %449 = vmatprep.subr.mxu0 0.0
    %450 = vmatpush1.msra.mxu0 0.0
    %451 = vmatprep.subr.mxu0 0.0
    %452 = vmatpush1.msra.mxu0 0.0
    %453 = vmatprep.subr.mxu0 0.0
    %454 = vmatpush1.msra.mxu0 0.0
    %455 = vmatprep.subr.mxu0 0.0
    %456 = vmatpush1.msra.mxu0 0.0
    %457 = vmatprep.subr.mxu0 0.0
    %458 = vmatpush1.msra.mxu0 0.0
    %459 = vmatprep.subr.mxu0 0.0
    %460 = vmatpush1.msra.mxu0 0.0
    %461 = vmatprep.subr.mxu0 0.0
    %462 = vmatpush1.msra.mxu0 0.0
    %463 = vmatprep.subr.mxu0 0.0
    %464 = vmatpush1.msra.mxu0 0.0
    %465 = vmatprep.subr.mxu0 0.0
    %466 = vmatpush1.msra.mxu0 0.0
    %467 = vmatprep.subr.mxu0 0.0
    %468 = vmatpush1.msra.mxu0 0.0
    %469 = vmatprep.subr.mxu0 0.0
    %470 = vmatpush1.msra.mxu0 0.0
    %471 = vmatprep.subr.mxu0 0.0
    %472 = vmatpush1.msra.mxu0 0.0
    %473 = vmatprep.subr.mxu0 0.0
    %474 = vmatpush1.msra.mxu0 0.0
    %475 = vmatprep.subr.mxu0 0.0
    %476 = vmatpush1.msra.mxu0 0.0
    %477 = vmatprep.subr.mxu0 0.0
    %478 = vmatpush1.msra.mxu0 0.0
    %479 = vmatprep.subr.mxu0 0.0
    %480 = vmatpush1.msra.mxu0 0.0
    %481 = vmatprep.subr.mxu0 0.0
    %482 = vmatpush1.msra.mxu0 0.0
    %483 = vmatprep.subr.mxu0 0.0
    %484 = vmatpush1.msra.mxu0 0.0
    %485 = vmatprep.subr.mxu0 0.0
    %486 = vmatpush1.msra.mxu0 0.0
    %487 = vmatprep.subr.mxu0 0.0
    %488 = vmatpush1.msra.mxu0 0.0
    %489 = vmatprep.subr.mxu0 0.0
    %490 = vmatpush1.msra.mxu0 0.0
    %491 = vmatprep.subr.mxu0 0.0
    %492 = vmatpush1.msra.mxu0 0.0
    %493 = vmatprep.subr.mxu0 0.0
    %494 = vmatpush1.msra.mxu0 0.0
    %495 = vmatprep.subr.mxu0 0.0
    %496 = vmatpush1.msra.mxu0 0.0
    %497 = vmatprep.subr.mxu0 0.0
    %498 = vmatpush1.msra.mxu0 0.0
    %499 = vmatprep.subr.mxu0 0.0
    %500 = vmatpush1.msra.mxu0 0.0
    %501 = vmatprep.subr.mxu0 0.0
    %502 = vmatpush1.msra.mxu0 0.0
    %503 = vmatprep.mubr.f32.mxu0 0.0
    %504 = vmatmul.mubr.f32.gmra.mrb[0].mxu0 %v437
    %v505 = vpop.f32.mrb[0].mxu0
    %v506 = vadd.f32 %v434, %v505
    %v507 = vpop.f32.mrb[0].mxu0
    %508 = vdwg.mxu0
    %509 = vst [vmem:[#allocation2] sm:$0x7f] %v506
    // Predicated region
    $region38: #{tpu_custom_call.1} parent=1 // pred_check
      _
    $region39: #{tpu_custom_call.1} parent=1 // pred_check_branch
      %511 = sbr.rel (0) target = $region41
    $region40: #{tpu_custom_call.1} parent=1 // pred_region
      %s513 = ssub.s32 128, 128
      %514 = vsyncadd [#allocation3], %s513
      %s516 = sshll.u32 [#allocation2], 4
      %s517 = int_to_ptr.vmem [resolvable:$true] %s516
      %519 = dma.vmem_to_hbm [thread:$0]  %s517, 128, %s9, [#allocation3]
    $region41: #{tpu_custom_call.1} parent=1 // pred_fallthru
      _
    // Predicated region
    $region42: #{tpu_custom_call.1} parent=1 // pred_check
      _
    $region43: #{tpu_custom_call.1} parent=1 // pred_check_branch
      %521 = sbr.rel (0) target = $region45
    $region44: #{tpu_custom_call.1} parent=1 // pred_region
      %522 = dma.done [#allocation3], 128
    $region45: #{tpu_custom_call.1} parent=1 // pred_fallthru
      _
    %523 = vsyncpa [#allocation3], 1

</llo_original>
